<compile_context>
chip_gen: v6e
topology: v6e:2x2x1
jax: 0.10.0
libtpu: 0.0.40
codegen_flags: <defaults>
</compile_context>

<pallas_src>
import functools

import jax
import jax.numpy as jnp
from jax import lax
from jax.experimental import pallas as pl
from jax.experimental.pallas import tpu as pltpu


def _round_down(n, m):
    return (n // m) * m


def linear_kernel(x_ref, w_ref, b_ref, o_ref, acc_ref, *, td, valid_d):
    """One (batch-tile, D-tile) step of the N=1 GEMV.

    x_ref: (tb, td) VMEM   w_ref: (1, td) VMEM   b_ref: (1, 1) SMEM
    o_ref: (tb, 1) VMEM    acc_ref: (tb, 1) f32 VMEM scratch
    """
    dj = pl.program_id(1)

    @pl.when(dj == 0)
    def _():
        acc_ref[...] = jnp.zeros_like(acc_ref)

    prod = x_ref[...] * w_ref[...]                 # VPU; (1, td) broadcasts over rows
    if valid_d is not None:
        # Trailing partial D tile: zero padded lanes before the reduction so the
        # garbage in the padded block region never reaches the accumulator.
        col = dj * td + lax.broadcasted_iota(jnp.int32, prod.shape, 1)
        prod = jnp.where(col < valid_d, prod, 0.0)
    acc_ref[...] += jnp.sum(prod, axis=-1, keepdims=True)   # XLU lane reduce

    @pl.when(dj == pl.num_programs(1) - 1)
    def _():
        o_ref[...] = (acc_ref[...] + b_ref[0, 0]).astype(o_ref.dtype)


def linear_forward(x, w, b, *, tile_budget_bytes=None):
    """x: (B, D), w: (1, D) (torch nn.Linear layout), b: (1, 1) -> (B, 1)."""
    B, D = x.shape
    assert w.shape == (1, D)
    assert b.shape == (1, 1)
    itemsize = x.dtype.itemsize
    bytes_per_row = D * itemsize

    # Per-generation byte budget for ONE x buffer (Pallas double-buffers it) and
    # the scoped-VMEM raise.  v7x has 64 MiB physical VMEM per TC; v5e/v6e 128 MiB.
    vmem_cap = 64 * 1024 * 1024                      # conservative fallback (v7x)
    try:
        vmem_cap = int(pltpu.get_tpu_info().vmem_capacity_bytes)
    except Exception:                                # best-effort HW query
        pass
    if vmem_cap > 64 * 1024 * 1024:                  # v5e / v6e (128 MiB physical)
        budget = 16 * 1024 * 1024
        vmem_limit = 64 * 1024 * 1024
    else:                                            # v7x (64 MiB per TensorCore)
        budget = 12 * 1024 * 1024
        vmem_limit = 44 * 1024 * 1024
    if tile_budget_bytes is not None:                # test hook / override
        budget = tile_budget_bytes

    # ---- tile selection ----
    if 8 * bytes_per_row <= budget:
        # Full feature dim fits with at least 8 rows: single D tile, batch tile
        # sized straight from the byte budget.
        td = D
        tb = max(8, budget // max(bytes_per_row, 1))
    else:
        # Huge D: add a D-reduction grid axis so each block stays a few MiB
        # instead of blowing past the scoped / physical VMEM limits.
        tb = 8
        td = max(128, _round_down(budget // (8 * itemsize), 128))
    tb = min(tb, B)
    # Keep at least 2 batch tiles when B allows, so the "parallel" batch axis
    # actually balances v7x's 2 TensorCores (no-op on 1-TC v5e/v6e).
    if B >= 16:
        tb = min(tb, max(8, _round_down(-(-B // 2), 8)))
    if tb < B:
        tb = max(8, _round_down(tb, 8))              # tiled axis keeps sublanes full

    n_b = pl.cdiv(B, tb)
    n_d = pl.cdiv(D, td)
    valid_d = D if (D % td) != 0 else None

    kernel = functools.partial(linear_kernel, td=td, valid_d=valid_d)

    # TODO(synk): D < 128 only uses D of 128 lanes per vreg; a wrapper-side
    # (B*D/128, 128) repack + segmented reduce would restore full lane use, but
    # it is noise for this HBM-bound GEMV.
    return pl.pallas_call(
        kernel,
        out_shape=jax.ShapeDtypeStruct((B, 1), x.dtype),
        grid_spec=pltpu.PrefetchScalarGridSpec(
            num_scalar_prefetch=0,
            grid=(n_b, n_d),                         # reduction (D) axis last
            in_specs=[
                # Streamed x tiles; Pallas double-buffers the DMA.
                pl.BlockSpec((tb, td), lambda i, j: (i, j)),
                # Lane-dense weight row tile (resident across the batch axis).
                pl.BlockSpec((1, td), lambda i, j: (0, j)),
                # Bias scalar through SMEM — no VMEM tile / vector load.
                pl.BlockSpec(memory_space=pltpu.MemorySpace.SMEM),
            ],
            out_specs=pl.BlockSpec((tb, 1), lambda i, j: (i, 0)),
            scratch_shapes=[pltpu.VMEM((tb, 1), jnp.float32)],
        ),
        compiler_params=pltpu.CompilerParams(
            dimension_semantics=("parallel", "arbitrary"),
            vmem_limit_bytes=vmem_limit,
        ),
    )(x, w, b)


def _ref(x, w, b):
    # Pure-f32 elementwise reference (matches nn.Linear math without relying on
    # XLA's default bf16 matmul precision).
    return jnp.sum(x * w, axis=-1, keepdims=True) + b[0, 0]


if __name__ == "__main__":
    key = jax.random.PRNGKey(0)

    # 1) Small shapes consistent with LinearModel(num_inputs).
    batch, num_inputs = 8, 32
    kx, kw, kb = jax.random.split(key, 3)
    x = jax.random.normal(kx, (batch, num_inputs), dtype=jnp.float32)
    bound = 1.0 / float(num_inputs) ** 0.5
    w = jax.random.uniform(kw, (1, num_inputs), dtype=jnp.float32,
                           minval=-bound, maxval=bound)
    b = jax.random.uniform(kb, (1, 1), dtype=jnp.float32,
                           minval=-bound, maxval=bound)
    out = linear_forward(x, w, b)
    jax.block_until_ready(out)
    assert out.shape == (batch, 1)
    assert jnp.allclose(out, _ref(x, w, b), atol=1e-5, rtol=1e-5)

    # 2) Multi batch-tile path (grid > 1 along batch, single D tile).
    B2, D2 = 1024, 128
    k2x, k2w, k2b = jax.random.split(jax.random.PRNGKey(1), 3)
    x2 = jax.random.normal(k2x, (B2, D2), dtype=jnp.float32)
    bnd2 = 1.0 / D2 ** 0.5
    w2 = jax.random.uniform(k2w, (1, D2), jnp.float32, minval=-bnd2, maxval=bnd2)
    b2 = jax.random.uniform(k2b, (1, 1), jnp.float32, minval=-bnd2, maxval=bnd2)
    out2 = linear_forward(x2, w2, b2)
    jax.block_until_ready(out2)
    assert jnp.allclose(out2, _ref(x2, w2, b2), atol=1e-4, rtol=1e-4)

    # 3) Force the D-reduction path (accumulator + masked partial D tile) with a
    #    small artificial tile budget; D=4000 is not a multiple of the D tile.
    B3, D3 = 16, 4000
    k3x, k3w, k3b = jax.random.split(jax.random.PRNGKey(2), 3)
    x3 = jax.random.normal(k3x, (B3, D3), dtype=jnp.float32)
    bnd3 = 1.0 / D3 ** 0.5
    w3 = jax.random.uniform(k3w, (1, D3), jnp.float32, minval=-bnd3, maxval=bnd3)
    b3 = jax.random.uniform(k3b, (1, 1), jnp.float32, minval=-bnd3, maxval=bnd3)
    out3 = linear_forward(x3, w3, b3, tile_budget_bytes=64 * 1024)
    jax.block_until_ready(out3)
    assert jnp.allclose(out3, _ref(x3, w3, b3), atol=1e-4, rtol=1e-4)

    print("KERNEL_OK")
</pallas_src>

<mosaic_0001>
module attributes {stable_mosaic.version = 11 : i64} {
  func.func @linear_kernel(%arg0: i32, %arg1: i32, %arg2: memref<8x32xf32, #tpu.memory_space<vmem>>, %arg3: memref<1x32xf32, #tpu.memory_space<vmem>>, %arg4: memref<1x1xf32, #tpu.memory_space<smem>>, %arg5: memref<8x1xf32, #tpu.memory_space<vmem>>, %arg6: memref<8x1xf32, #tpu.memory_space<vmem>>) attributes {dimension_semantics = [#tpu.dimension_semantics<parallel>, #tpu.dimension_semantics<arbitrary>], iteration_bounds = array<i64: 1, 1>, scalar_prefetch = 0 : i64, scratch_operands = 1 : i64, tpu.core_type = #tpu.core_type<tc>, window_params = [{transform_indices = @transform_0, window_bounds = array<i64: 8, 32>}, {transform_indices = @transform_1, window_bounds = array<i64: 1, 32>}, {transform_indices = @transform_2, window_bounds = array<i64: 1, 1>}, {transform_indices = @transform_3, window_bounds = array<i64: 8, 1>}]} {
    %c0_i32 = arith.constant 0 : i32
    %0 = arith.cmpi eq, %arg1, %c0_i32 : i32
    %1 = arith.extui %0 : i1 to i32
    %c0_i32_0 = arith.constant 0 : i32
    %2 = arith.cmpi ne, %1, %c0_i32_0 : i32
    scf.if %2 {
      %cst_10 = arith.constant 0.000000e+00 : f32
      %15 = vector.broadcast %cst_10 : f32 to vector<8x1xf32>
      %c0_11 = arith.constant 0 : index
      %c0_12 = arith.constant 0 : index
      %16 = vector.load %arg6[%c0_11, %c0_12] : memref<8x1xf32, #tpu.memory_space<vmem>>, vector<8x1xf32>
      tpu.vector_store %arg6[%c0_11, %c0_12], %15 {strides = array<i32>} : memref<8x1xf32, #tpu.memory_space<vmem>>, vector<8x1xf32>,
    } else {
    }
    %c0 = arith.constant 0 : index
    %c0_1 = arith.constant 0 : index
    %3 = vector.load %arg2[%c0, %c0_1] : memref<8x32xf32, #tpu.memory_space<vmem>>, vector<8x32xf32>
    %c0_2 = arith.constant 0 : index
    %c0_3 = arith.constant 0 : index
    %4 = vector.load %arg3[%c0_2, %c0_3] : memref<1x32xf32, #tpu.memory_space<vmem>>, vector<1x32xf32>
    %5 = vector.broadcast %4 : vector<1x32xf32> to vector<8x32xf32>
    %6 = arith.mulf %3, %5 : vector<8x32xf32>
    %c0_4 = arith.constant 0 : index
    %c0_5 = arith.constant 0 : index
    %7 = vector.load %arg6[%c0_4, %c0_5] : memref<8x1xf32, #tpu.memory_space<vmem>>, vector<8x1xf32>
    %cst = arith.constant dense<0.000000e+00> : vector<8xf32>
    %8 = vector.multi_reduction <add>, %6, %cst [1] : vector<8x32xf32> to vector<8xf32>
    %9 = vector.shape_cast %8 : vector<8xf32> to vector<8x1xf32>
    %10 = arith.addf %7, %9 : vector<8x1xf32>
    %c0_6 = arith.constant 0 : index
    %c0_7 = arith.constant 0 : index
    %11 = vector.load %arg6[%c0_6, %c0_7] : memref<8x1xf32, #tpu.memory_space<vmem>>, vector<8x1xf32>
    tpu.vector_store %arg6[%c0_6, %c0_7], %10 {strides = array<i32>} : memref<8x1xf32, #tpu.memory_space<vmem>>, vector<8x1xf32>,
    %c0_i32_8 = arith.constant 0 : i32
    %12 = arith.cmpi eq, %arg1, %c0_i32_8 : i32
    %13 = arith.extui %12 : i1 to i32
    %c0_i32_9 = arith.constant 0 : i32
    %14 = arith.cmpi ne, %13, %c0_i32_9 : i32
    scf.if %14 {
      %c0_10 = arith.constant 0 : index
      %c0_11 = arith.constant 0 : index
      %15 = vector.load %arg6[%c0_10, %c0_11] : memref<8x1xf32, #tpu.memory_space<vmem>>, vector<8x1xf32>
      %c0_12 = arith.constant 0 : index
      %c0_13 = arith.constant 0 : index
      %16 = memref.load %arg4[%c0_12, %c0_13] : memref<1x1xf32, #tpu.memory_space<smem>>
      %17 = vector.broadcast %16 : f32 to vector<8x1xf32>
      %18 = arith.addf %15, %17 : vector<8x1xf32>
      %c0_14 = arith.constant 0 : index
      %c0_15 = arith.constant 0 : index
      %19 = vector.load %arg5[%c0_14, %c0_15] : memref<8x1xf32, #tpu.memory_space<vmem>>, vector<8x1xf32>
      tpu.vector_store %arg5[%c0_14, %c0_15], %18 {strides = array<i32>} : memref<8x1xf32, #tpu.memory_space<vmem>>, vector<8x1xf32>,
    } else {
    }
    return
  }
  func.func @transform_0(%arg0: i32, %arg1: i32) -> (i32, i32) {
    %c0_i32 = arith.constant 0 : i32
    return %arg0, %arg1 : i32, i32
  }
  func.func @transform_1(%arg0: i32, %arg1: i32) -> (i32, i32) {
    %c0_i32 = arith.constant 0 : i32
    %c0_i32_0 = arith.constant 0 : i32
    return %c0_i32, %arg1 : i32, i32
  }
  func.func @transform_2(%arg0: i32, %arg1: i32) -> (i32, i32) {
    %c0_i32 = arith.constant 0 : i32
    %c0_i32_0 = arith.constant 0 : i32
    %c0_i32_1 = arith.constant 0 : i32
    return %c0_i32, %c0_i32_0 : i32, i32
  }
  func.func @transform_3(%arg0: i32, %arg1: i32) -> (i32, i32) {
    %c0_i32 = arith.constant 0 : i32
    %c0_i32_0 = arith.constant 0 : i32
    return %arg0, %c0_i32 : i32, i32
  }
}

</mosaic_0001>

<llo_original>
// kernel: tpu_custom_call.1
$region0: #{tpu_custom_call.1}
  #allocation0 [shape = 'u32[]', space=smem, size = 0x4, offset = 0x4, fixed_abs, tag = 'smem constant byte address 0x4 - core index']
  #allocation1 [shape = 'u32[144,128]{1,0:T(1,128)}', space=vmem, size = 0x12000, scoped, tag = 'internal scratch']
  #allocation2 [shape = 'f32[8,1]{1,0:T(8,128)}', space=vmem, size = 0x1000, scoped, tag = 'scratch operand']
  #allocation3 [shape = 'f32[1,1]{1,0:T(1,128)S(6)}', space=smem, size = 0x200, scoped, tag = 'scoped memory for tpu_custom_call.1']
  %s0 = inlined_call_operand.hbm [shape: f32[8,32], index: 0, kind: input, shape index: {}]
  %s1 = inlined_call_operand.vmem [shape: f32[1,32], index: 1, kind: input, shape index: {}]
  %s2 = inlined_call_operand.<no memory space> [shape: f32[1,1], index: 2, kind: input, shape index: {}]
  %s3 = inlined_call_operand.vmem [shape: f32[8,1], index: 3, kind: output, shape index: {}]
  %s4 = sld [smem:[#allocation0]]
  $region34: #{tpu_custom_call.1} parent=0
    _
  %s6 = ssub.s32 1, %s4
  %s7 = scalar_select 0, %s6, %s4
  %8 = sst [smem:[#allocation3]] %s2
  $region1: #{tpu_custom_call.1} parent=0
    #allocation4 [shape = 'u8[4096]{0}', space=vmem, size = 0x1000, scoped, tag = 'input window, operand 0, single buffered']
    #allocation5 [shape = 's32[1]{0}', space=sflag, size = 0x4, scoped, tag = 'scoped memory for tpu_custom_call.1']
    %9 = vsyncpa [#allocation5], 0
    // Predicated region
    $region2: #{tpu_custom_call.1} parent=1 // pred_check
      _
    $region3: #{tpu_custom_call.1} parent=1 // pred_check_branch
      %11 = sbr.rel (0) target = $region5
    $region4: #{tpu_custom_call.1} parent=1 // pred_region
      %s13 = ssub.s32 128, 128
      %14 = vsyncadd [#allocation5], %s13
      %s16 = sshll.u32 [#allocation4], 4
      %s17 = int_to_ptr.vmem [resolvable:$true] %s16
      %19 = dma.hbm_to_vmem [thread:$0]  %s0, 128, %s17, [#allocation5]
    $region5: #{tpu_custom_call.1} parent=1 // pred_fallthru
      _
    // Predicated region
    $region6: #{tpu_custom_call.1} parent=1 // pred_check
      _
    $region7: #{tpu_custom_call.1} parent=1 // pred_check_branch
      %21 = sbr.rel (0) target = $region9
    $region8: #{tpu_custom_call.1} parent=1 // pred_region
      _
    $region9: #{tpu_custom_call.1} parent=1 // pred_fallthru
      _
    // Predicated region
    $region10: #{tpu_custom_call.1} parent=1 // pred_check
      _
    $region11: #{tpu_custom_call.1} parent=1 // pred_check_branch
      %23 = sbr.rel (0) target = $region13
    $region12: #{tpu_custom_call.1} parent=1 // pred_region
      _
    $region13: #{tpu_custom_call.1} parent=1 // pred_fallthru
      _
    // Predicated region
    $region14: #{tpu_custom_call.1} parent=1 // pred_check
      _
    $region15: #{tpu_custom_call.1} parent=1 // pred_check_branch
      %25 = sbr.rel (0) target = $region17
    $region16: #{tpu_custom_call.1} parent=1 // pred_region
      %26 = dma.done [#allocation5], 128
    $region17: #{tpu_custom_call.1} parent=1 // pred_fallthru
      _
    %p27 = scmp.eq.s32.totalorder 0, 0
    // Predicated region
    $region18: #{tpu_custom_call.1} parent=1 // pred_check
      %p28 = pneg %p27
    $region19: #{tpu_custom_call.1} parent=1 // pred_check_branch
      %30 = sbr.rel (%p28) target = $region21
    $region20: #{tpu_custom_call.1} parent=1 // pred_region
      %vm31 = vcmask 7168
      %32 = vst.msk [vmem:[#allocation2] sm:$0xff] %vm31, 0.0
    $region21: #{tpu_custom_call.1} parent=1 // pred_fallthru
      _
    %v33 = vld [vmem:[#allocation4] sm:$0xff]
    %v34 = vld [vmem:[%s1] sm:$0x1]
    %v36 = vlaneseq
    %v37 = vshrl.u32 %v36, 7
    %v38 = vsub.s32 0, %v37
    %v39 = vrot.slane %v34, %v38
    %v41 = vmul.f32 %v33, %v39
    %v42 = vld [vmem:[#allocation2] sm:$0xff]
    %vm43 = vcmask 261120
    %v44 = vsel %vm43, %v41, 0.0
    %45 = vadd.xlane.f32.xlu0 %v44
    %v46 = vpop.xlane.xlu0 %45
    %v47 = vadd.f32 %v42, %v46
    %vm48 = vcmask 7168
    %49 = vst.msk [vmem:[#allocation2] sm:$0xff] %vm48, %v47
    // Predicated region
    $region22: #{tpu_custom_call.1} parent=1 // pred_check
      %p50 = pneg %p27
    $region23: #{tpu_custom_call.1} parent=1 // pred_check_branch
      %52 = sbr.rel (%p50) target = $region25
    $region24: #{tpu_custom_call.1} parent=1 // pred_region
      %v53 = vld [vmem:[#allocation2] sm:$0xff]
      %s54 = sld [smem:[#allocation3]]
      %v55 = vstv %s54
      %v56 = vadd.f32 %v53, %v55
      %57 = vst.msk [vmem:[%s3] sm:$0xff] %vm48, %v56
    $region25: #{tpu_custom_call.1} parent=1 // pred_fallthru
      _
    // Predicated region
    $region26: #{tpu_custom_call.1} parent=1 // pred_check
      _
    $region27: #{tpu_custom_call.1} parent=1 // pred_check_branch
      %59 = sbr.rel (0) target = $region29
    $region28: #{tpu_custom_call.1} parent=1 // pred_region
      _
    $region29: #{tpu_custom_call.1} parent=1 // pred_fallthru
      _
    // Predicated region
    $region30: #{tpu_custom_call.1} parent=1 // pred_check
      _
    $region31: #{tpu_custom_call.1} parent=1 // pred_check_branch
      %61 = sbr.rel (0) target = $region33
    $region32: #{tpu_custom_call.1} parent=1 // pred_region
      _
    $region33: #{tpu_custom_call.1} parent=1 // pred_fallthru
      _
    %62 = vsyncpa [#allocation5], 1

</llo_original>
